<compile_context>
chip_gen: v6e
topology: v6e:2x2x1
jax: 0.10.0
libtpu: 0.0.40
codegen_flags: <defaults>
</compile_context>

<pallas_src>
import functools

import jax
import jax.numpy as jnp
from jax.experimental import pallas as pl
from jax.experimental.pallas import tpu as pltpu

_LANE = 128


def _laplacian_kernel(scale_ref, u_ref, o_ref, *, true_w, compute_dtype):
    """scale_ref: SMEM (1,) f32 = D/dx^2; u_ref/o_ref: VMEM (TR, Wp) tile (full padded W)."""
    u = u_ref[...].astype(compute_dtype)               # (TR, Wp)
    wp = u.shape[-1]
    # Circular neighbors via XLU lane rotations == circular pad + [1,-2,1] conv.
    u_left = pltpu.roll(u, shift=1, axis=1)            # u[i-1] (wraps over Wp)
    u_right = pltpu.roll(u, shift=wp - 1, axis=1)      # u[i+1] (wraps over Wp)
    if true_w != wp:
        # W was padded to a lane multiple: fix the circular seam so the wrap is
        # over the true width, not the padded width (static slices -> no gather).
        col = jax.lax.broadcasted_iota(jnp.int32, u.shape, 1)
        u_left = jnp.where(col == 0, u[:, true_w - 1:true_w], u_left)
        u_right = jnp.where(col == true_w - 1, u[:, 0:1], u_right)
    scale = scale_ref[0].astype(compute_dtype)          # pre-folded D / dx^2
    o_ref[...] = (scale * (u_left - 2 * u + u_right)).astype(o_ref.dtype)


def _device_config():
    """Generation-aware tile cap / VMEM budget / low-precision-compute policy."""
    try:
        kind = jax.devices()[0].device_kind.lower()
    except Exception:  # pragma: no cover - defensive
        kind = ""
    is_v5 = "v5" in kind
    # bf16 VALU only on v6e / v7x; keep f32 math elsewhere.
    allow_low_precision = ("v6" in kind) or ("v7" in kind) or ("7x" in kind)
    if is_v5:
        # 4 buffers x 4 MiB = 16 MiB of tile buffers, scoped limit raised to 32 MiB.
        return dict(cap_bytes=4 << 20, vmem_limit=32 << 20,
                    allow_low_precision=False)
    # v6e / v7x / default: 4 buffers x 8 MiB = 32 MiB, limit 48 MiB
    # (fits under v7x's 64 MiB per-TC physical VMEM with headroom).
    return dict(cap_bytes=8 << 20, vmem_limit=48 << 20,
                allow_low_precision=allow_low_precision)


def _pick_row_tile(rows, width_padded, itemsize, cap_bytes):
    cap = max(8, (cap_bytes // (width_padded * itemsize)) // 8 * 8)
    if rows <= cap:
        return rows          # single full-extent block (always a legal block shape)
    return cap               # multiple of 8; partial last block handled by Pallas


def parametric_part_forward(state, D, dx, *, row_tile=None):
    """state: (N, C, W); D: scalar parameter; dx: python float.

    Equivalent to: D * conv1d(circular_pad(state, 1), [1, -2, 1] / dx**2).
    """
    N, C, W = state.shape
    rows = N * C
    cfg = _device_config()

    # Pad W up to a lane multiple so stores are unmasked, lane-dense vst.
    Wp = ((W + _LANE - 1) // _LANE) * _LANE
    u2 = state.reshape(rows, W)
    if Wp != W:
        u2 = jnp.pad(u2, ((0, 0), (0, Wp - W)))

    itemsize = u2.dtype.itemsize

    # Guard: minimal tile (8 rows x Wp) must fit the double-buffered budget.
    min_tile_bytes = min(rows, 8) * Wp * itemsize
    if 4 * min_tile_bytes > cfg["vmem_limit"] - (1 << 20):
        # TODO(synk): add a W-tiled variant with a 1-column halo for very wide W.
        raise ValueError(
            f"W={W} too wide for row-only tiling under a "
            f"{cfg['vmem_limit'] >> 20} MiB VMEM budget")

    # Fold D * (1/dx^2) into one scalar on the host (scalar-only work; not the
    # "pre-scale the tensor in the wrapper" anti-pattern).
    scale = (jnp.asarray(D, jnp.float32) * jnp.float32(1.0 / (dx * dx))).reshape(1)

    if state.dtype == jnp.bfloat16 and cfg["allow_low_precision"]:
        compute_dtype = jnp.bfloat16     # bf16 VALU on v6e/v7x; halves vreg pressure
    else:
        compute_dtype = jnp.float32

    tr = row_tile if row_tile is not None else _pick_row_tile(
        rows, Wp, itemsize, cfg["cap_bytes"])
    num_tiles = pl.cdiv(rows, tr)

    cost = pl.CostEstimate(
        flops=5 * rows * Wp,
        transcendentals=0,
        bytes_accessed=2 * rows * Wp * itemsize,
    )

    out = pl.pallas_call(
        functools.partial(_laplacian_kernel, true_w=W, compute_dtype=compute_dtype),
        out_shape=jax.ShapeDtypeStruct((rows, Wp), state.dtype),
        grid_spec=pltpu.PrefetchScalarGridSpec(
            num_scalar_prefetch=0,
            grid=(num_tiles,),
            in_specs=[
                pl.BlockSpec(memory_space=pltpu.MemorySpace.SMEM),   # scale, untiled
                pl.BlockSpec((tr, Wp), lambda i: (i, 0)),            # U row tile, full W
            ],
            out_specs=pl.BlockSpec((tr, Wp), lambda i: (i, 0)),
        ),
        compiler_params=pltpu.CompilerParams(
            # Row tiles are independent: shards across both TensorCores on v7x,
            # harmless no-op on single-TC v5e/v6e.
            dimension_semantics=("parallel",),
            vmem_limit_bytes=cfg["vmem_limit"],
        ),
        cost_estimate=cost,
    )(scale, u2)

    if Wp != W:
        out = out[:, :W]
    return out.reshape(N, C, W)


def _reference(state, D, dx):
    u = state.astype(jnp.float32)
    lap = (jnp.roll(u, 1, axis=-1) - 2.0 * u + jnp.roll(u, -1, axis=-1)) / (dx * dx)
    return (jnp.asarray(D, jnp.float32) * lap).astype(state.dtype)


if __name__ == "__main__":
    k1, k2, k3, k4 = jax.random.split(jax.random.PRNGKey(0), 4)
    dx = 0.5
    # Module __init__ sets D = 0.0 (scalar parameter); use a nonzero
    # deterministic value so the kernel output is non-trivial.
    D = jnp.float32(0.1)

    # Small shape consistent with the module: (N, C=1, W) conv1d input layout.
    N, C, W = 2, 1, 128
    x = jax.random.normal(k1, (N, C, W), dtype=jnp.float32)
    out = jax.block_until_ready(parametric_part_forward(x, D, dx))
    assert out.shape == (N, C, W)
    assert jnp.allclose(out, _reference(x, D, dx), atol=1e-5, rtol=1e-5)

    # Tiled, pipelined grid (rows=32, row_tile=8 -> 4 grid steps).
    x2 = jax.random.normal(k2, (32, 1, 256), dtype=jnp.float32)
    out2 = jax.block_until_ready(parametric_part_forward(x2, D, dx, row_tile=8))
    assert jnp.allclose(out2, _reference(x2, D, dx), atol=1e-5, rtol=1e-5)

    # Non-lane-multiple width: exercises the pad + circular-seam-fix path.
    x3 = jax.random.normal(k3, (4, 1, 100), dtype=jnp.float32)
    out3 = jax.block_until_ready(parametric_part_forward(x3, D, dx))
    assert jnp.allclose(out3, _reference(x3, D, dx), atol=1e-5, rtol=1e-5)

    # bf16 storage: bf16 math on v6e/v7x, f32 math elsewhere.
    x4 = jax.random.normal(k4, (8, 1, 256), dtype=jnp.float32).astype(jnp.bfloat16)
    out4 = jax.block_until_ready(parametric_part_forward(x4, D, dx))
    assert jnp.allclose(out4.astype(jnp.float32),
                        _reference(x4, D, dx).astype(jnp.float32),
                        atol=2e-2, rtol=2e-2)

    print("KERNEL_OK")
</pallas_src>

<mosaic_0001>
module attributes {stable_mosaic.version = 11 : i64} {
  func.func @_laplacian_kernel(%arg0: i32, %arg1: memref<1xf32, #tpu.memory_space<smem>>, %arg2: memref<2x128xf32, #tpu.memory_space<vmem>>, %arg3: memref<2x128xf32, #tpu.memory_space<vmem>>) attributes {dimension_semantics = [#tpu.dimension_semantics<parallel>], iteration_bounds = array<i64: 1>, scalar_prefetch = 0 : i64, scratch_operands = 0 : i64, tpu.core_type = #tpu.core_type<tc>, window_params = [{transform_indices = @transform_0, window_bounds = array<i64: 1>}, {transform_indices = @transform_1, window_bounds = array<i64: 2, 128>}, {transform_indices = @transform_2, window_bounds = array<i64: 2, 128>}]} {
    %c0 = arith.constant 0 : index
    %c0_0 = arith.constant 0 : index
    %0 = vector.load %arg2[%c0, %c0_0] : memref<2x128xf32, #tpu.memory_space<vmem>>, vector<2x128xf32>
    %c1_i32 = arith.constant 1 : i32
    %1 = tpu.dynamic_rotate %0 by %c1_i32 dim 1 : vector<2x128xf32>, i32 -> vector<2x128xf32>
    %c127_i32 = arith.constant 127 : i32
    %2 = tpu.dynamic_rotate %0 by %c127_i32 dim 1 : vector<2x128xf32>, i32 -> vector<2x128xf32>
    %c0_1 = arith.constant 0 : index
    %3 = memref.load %arg1[%c0_1] : memref<1xf32, #tpu.memory_space<smem>>
    %cst = arith.constant 2.000000e+00 : f32
    %4 = vector.broadcast %cst : f32 to vector<2x128xf32>
    %5 = arith.mulf %4, %0 : vector<2x128xf32>
    %6 = arith.subf %1, %5 : vector<2x128xf32>
    %7 = arith.addf %6, %2 : vector<2x128xf32>
    %8 = vector.broadcast %3 : f32 to vector<2x128xf32>
    %9 = arith.mulf %8, %7 : vector<2x128xf32>
    %c0_2 = arith.constant 0 : index
    %c0_3 = arith.constant 0 : index
    %10 = vector.load %arg3[%c0_2, %c0_3] : memref<2x128xf32, #tpu.memory_space<vmem>>, vector<2x128xf32>
    tpu.vector_store %arg3[%c0_2, %c0_3], %9 {strides = array<i32>} : memref<2x128xf32, #tpu.memory_space<vmem>>, vector<2x128xf32>,
    return
  }
  func.func @transform_0(%arg0: i32) -> i32 {
    %c0_i32 = arith.constant 0 : i32
    %c0_i32_0 = arith.constant 0 : i32
    return %c0_i32 : i32
  }
  func.func @transform_1(%arg0: i32) -> (i32, i32) {
    %c0_i32 = arith.constant 0 : i32
    %c0_i32_0 = arith.constant 0 : i32
    return %arg0, %c0_i32 : i32, i32
  }
  func.func @transform_2(%arg0: i32) -> (i32, i32) {
    %c0_i32 = arith.constant 0 : i32
    %c0_i32_0 = arith.constant 0 : i32
    return %arg0, %c0_i32 : i32, i32
  }
}

</mosaic_0001>

<llo_original>
// kernel: tpu_custom_call.1
$region0: #{tpu_custom_call.1}
  #allocation0 [shape = 'u32[]', space=smem, size = 0x4, offset = 0x4, fixed_abs, tag = 'smem constant byte address 0x4 - core index']
  #allocation1 [shape = 'u32[144,128]{1,0:T(1,128)}', space=vmem, size = 0x12000, scoped, tag = 'internal scratch']
  #allocation2 [shape = 'f32[1]{0:T(128)S(6)}', space=smem, size = 0x200, scoped, tag = 'scoped memory for tpu_custom_call.1']
  %s0 = inlined_call_operand.<no memory space> [shape: f32[1], index: 0, kind: input, shape index: {}]
  %s1 = inlined_call_operand.vmem [shape: f32[2,128], index: 1, kind: input, shape index: {}]
  %s2 = inlined_call_operand.hbm [shape: f32[2,128], index: 2, kind: output, shape index: {}]
  %s3 = sld [smem:[#allocation0]]
  $region18: #{tpu_custom_call.1} parent=0
    _
  %s5 = ssub.s32 1, %s3
  %s6 = scalar_select 0, %s5, %s3
  %7 = sst [smem:[#allocation2]] %s0
  $region1: #{tpu_custom_call.1} parent=0
    #allocation3 [shape = 'u8[1024]{0}', space=vmem, size = 0x400, scoped, tag = 'output window, operand 0, single buffered']
    #allocation4 [shape = 's32[1]{0}', space=sflag, size = 0x4, scoped, tag = 'scoped memory for tpu_custom_call.1']
    %8 = vsyncpa [#allocation4], 0
    // Predicated region
    $region2: #{tpu_custom_call.1} parent=1 // pred_check
      _
    $region3: #{tpu_custom_call.1} parent=1 // pred_check_branch
      %10 = sbr.rel (0) target = $region5
    $region4: #{tpu_custom_call.1} parent=1 // pred_region
      _
    $region5: #{tpu_custom_call.1} parent=1 // pred_fallthru
      _
    // Predicated region
    $region6: #{tpu_custom_call.1} parent=1 // pred_check
      _
    $region7: #{tpu_custom_call.1} parent=1 // pred_check_branch
      %12 = sbr.rel (0) target = $region9
    $region8: #{tpu_custom_call.1} parent=1 // pred_region
      _
    $region9: #{tpu_custom_call.1} parent=1 // pred_fallthru
      _
    %v13 = vld [vmem:[%s1] sm:$0x3]
    %14 = vrot.lane.b32.xlu0 %v13, 1
    %v15 = vpop.permute.xlu0 %14
    %16 = vrot.lane.b32.xlu0 %v13, 127
    %v17 = vpop.permute.xlu0 %16
    %s18 = sld [smem:[#allocation2]]
    %v19 = vmul.f32 %v13, 2.0
    %v20 = vsub.f32 %v15, %v19
    %v21 = vadd.f32 %v20, %v17
    %v22 = vstv %s18
    %v23 = vmul.f32 %v22, %v21
    %24 = vst [vmem:[#allocation3] sm:$0x3] %v23
    // Predicated region
    $region10: #{tpu_custom_call.1} parent=1 // pred_check
      _
    $region11: #{tpu_custom_call.1} parent=1 // pred_check_branch
      %26 = sbr.rel (0) target = $region13
    $region12: #{tpu_custom_call.1} parent=1 // pred_region
      %s28 = ssub.s32 32, 32
      %29 = vsyncadd [#allocation4], %s28
      %s31 = sshll.u32 [#allocation3], 4
      %s32 = int_to_ptr.vmem [resolvable:$true] %s31
      %34 = dma.vmem_to_hbm [thread:$0]  %s32, 32, %s2, [#allocation4]
    $region13: #{tpu_custom_call.1} parent=1 // pred_fallthru
      _
    // Predicated region
    $region14: #{tpu_custom_call.1} parent=1 // pred_check
      _
    $region15: #{tpu_custom_call.1} parent=1 // pred_check_branch
      %36 = sbr.rel (0) target = $region17
    $region16: #{tpu_custom_call.1} parent=1 // pred_region
      %37 = dma.done [#allocation4], 32
    $region17: #{tpu_custom_call.1} parent=1 // pred_fallthru
      _
    %38 = vsyncpa [#allocation4], 1

</llo_original>
